<compile_context>
chip_gen: v7x
topology: tpu7x:2x2x1
jax: 0.10.0
libtpu: 0.0.40
codegen_flags: <defaults>
</compile_context>

<pallas_src>
import functools
import math

import jax
import jax.numpy as jnp
from jax.experimental import pallas as pl
from jax.experimental.pallas import tpu as pltpu


# --------------------------------------------------------------------------
# Parameter setup (deterministic, identical formula to the torch __init__).
# Build directly in the target dtype so the forward pass needs no cast.
# --------------------------------------------------------------------------
def make_positional_encoding(d_model: int, max_len: int = 10000,
                             dtype=jnp.float32) -> jnp.ndarray:
    position = jnp.arange(max_len, dtype=jnp.float32)[:, None]            # (L, 1)
    div_term = jnp.exp(jnp.arange(0, d_model, 2, dtype=jnp.float32)
                       * (-math.log(10000.0) / d_model))                  # (ceil(D/2),)
    angles = position * div_term                                          # (L, ceil(D/2))
    pe = jnp.zeros((max_len, d_model), jnp.float32)
    pe = pe.at[:, 0::2].set(jnp.sin(angles))
    # guard odd d_model: cos column count is floor(D/2)
    pe = pe.at[:, 1::2].set(jnp.cos(angles)[:, : d_model // 2])
    return pe.astype(dtype)


# --------------------------------------------------------------------------
# Kernels
# --------------------------------------------------------------------------
def _pe_add_flat_kernel(x_ref, pe_ref, o_ref, *, batch: int):
    # x_ref / o_ref: (TS, B*D); pe_ref: (TS, D).
    # Replicate pe over the batch along the lane axis in-kernel (cheap; the
    # kernel is HBM-bound so VPU/XLU work is free filler).
    o_ref[...] = x_ref[...] + jnp.tile(pe_ref[...], (1, batch))


def _pe_add_3d_kernel(x_ref, pe_ref, o_ref):
    # x_ref / o_ref: (TS, B, D); pe_ref: (TS, D) — broadcast over batch axis.
    o_ref[...] = x_ref[...] + pe_ref[...][:, None, :]


# --------------------------------------------------------------------------
# Tiling helpers
# --------------------------------------------------------------------------
def _sublane_pack(dtype) -> int:
    """Rows per fully-packed sublane group: 8 for f32, 16 for bf16, 32 for i8."""
    itemsize = jnp.dtype(dtype).itemsize
    return 8 * max(1, 4 // itemsize)


def _choose_ts(seq_len: int, row_bytes: int, pack: int,
               target_bytes: int = 4 << 20) -> int:
    """Rows per grid step: ~4 MiB x-tile (double-buffered x+out ~= 16 MiB,
    inside the explicit vmem limit below on v5e/v6e/v7x), rounded to the
    dtype's sublane packing, or the full sequence length."""
    ts = max(1, target_bytes // max(row_bytes, 1))
    ts -= ts % pack
    ts = max(ts, pack)
    if ts >= seq_len:
        return int(seq_len)
    return int(ts)


# --------------------------------------------------------------------------
# Wrapper
# --------------------------------------------------------------------------
def positional_encoding_forward(x: jnp.ndarray, pe: jnp.ndarray, *,
                                block_rows: int | None = None) -> jnp.ndarray:
    """x: (S, B, D); pe: (max_len, D) with max_len >= S.  Returns x + pe[:S].

    `block_rows` overrides the auto-chosen rows-per-step (testing only)."""
    S, B, D = x.shape
    if pe.dtype != x.dtype:           # no-op when pe was built in the target dtype
        pe = pe.astype(x.dtype)

    itemsize = jnp.dtype(x.dtype).itemsize
    pack = _sublane_pack(x.dtype)
    row_bytes = B * D * itemsize
    ts = block_rows if block_rows is not None else _choose_ts(S, row_bytes, pack)
    ts = int(min(ts, S))
    grid = (pl.cdiv(S, ts),)

    cparams = pltpu.CompilerParams(
        dimension_semantics=("parallel",),   # megacore sharding of S on v7x
        vmem_limit_bytes=48 << 20,           # 2*(x+out) 4 MiB tiles + scratch
    )
    cost = pl.CostEstimate(
        flops=S * B * D,
        transcendentals=0,
        bytes_accessed=(2 * S * B * D + S * D) * itemsize,
    )

    # 3-D layout only when it is sublane/lane dense; otherwise small batches
    # waste 8/B of every native (8,128) tile on the sublane axis.
    use_3d = (D % 128 == 0) and (B % pack == 0)

    if use_3d:
        return pl.pallas_call(
            _pe_add_3d_kernel,
            out_shape=jax.ShapeDtypeStruct((S, B, D), x.dtype),
            grid_spec=pl.GridSpec(
                grid=grid,
                in_specs=[
                    pl.BlockSpec((ts, B, D), lambda s: (s, 0, 0)),   # x tile
                    pl.BlockSpec((ts, D), lambda s: (s, 0)),         # pe rows only
                ],
                out_specs=pl.BlockSpec((ts, B, D), lambda s: (s, 0, 0)),
            ),
            compiler_params=cparams,
            cost_estimate=cost,
        )(x, pe)

    # Lane-dense folded layout: (S, B*D) for x/out; pe stays (ts, D) and is
    # replicated over the batch inside the kernel (no full-size pe in HBM).
    C = B * D
    x2 = x.reshape(S, C)
    out2 = pl.pallas_call(
        functools.partial(_pe_add_flat_kernel, batch=B),
        out_shape=jax.ShapeDtypeStruct((S, C), x.dtype),
        grid_spec=pl.GridSpec(
            grid=grid,
            in_specs=[
                pl.BlockSpec((ts, C), lambda s: (s, 0)),             # x tile
                pl.BlockSpec((ts, D), lambda s: (s, 0)),             # pe rows only
            ],
            out_specs=pl.BlockSpec((ts, C), lambda s: (s, 0)),
        ),
        compiler_params=cparams,
        cost_estimate=cost,
    )(x2, pe)
    return out2.reshape(S, B, D)


# --------------------------------------------------------------------------
# Demo / self-check
# --------------------------------------------------------------------------
if __name__ == "__main__":
    key = jax.random.PRNGKey(0)
    k1, k2, k3, k4 = jax.random.split(key, 4)
    MAX_LEN = 64

    # Case 1: narrow d_model (< 128), small batch -> folded lane-dense path.
    S, B, D = 8, 2, 32
    x = jax.random.normal(k1, (S, B, D), dtype=jnp.float32)
    pe = make_positional_encoding(D, MAX_LEN, dtype=x.dtype)
    out = jax.block_until_ready(positional_encoding_forward(x, pe))
    ref = x + pe[:S][:, None, :]
    assert out.shape == (S, B, D)
    assert jnp.allclose(out, ref, atol=1e-6), "mismatch (folded path, D=32)"

    # Case 2: lane-aligned d_model but small batch -> still the folded path
    # (B=2 would waste 6/8 sublanes in a (ts, B, D) block).
    S2, B2, D2 = 16, 2, 128
    x2 = jax.random.normal(k2, (S2, B2, D2), dtype=jnp.float32)
    pe2 = make_positional_encoding(D2, MAX_LEN, dtype=x2.dtype)
    out2 = jax.block_until_ready(positional_encoding_forward(x2, pe2))
    ref2 = x2 + pe2[:S2][:, None, :]
    assert out2.shape == (S2, B2, D2)
    assert jnp.allclose(out2, ref2, atol=1e-6), "mismatch (folded path, D=128)"

    # Case 3: lane-aligned d_model AND sublane-dense batch -> 3-D path.
    S3, B3, D3 = 16, 8, 128
    x3 = jax.random.normal(k3, (S3, B3, D3), dtype=jnp.float32)
    pe3 = make_positional_encoding(D3, MAX_LEN, dtype=x3.dtype)
    out3 = jax.block_until_ready(positional_encoding_forward(x3, pe3))
    ref3 = x3 + pe3[:S3][:, None, :]
    assert out3.shape == (S3, B3, D3)
    assert jnp.allclose(out3, ref3, atol=1e-6), "mismatch (3-D path)"

    # Case 4: seq length NOT divisible by the tile (forced block_rows=8,
    # S=20 -> grid of 3 with a padded trailing block) — padded writes dropped.
    S4, B4, D4 = 20, 2, 32
    x4 = jax.random.normal(k4, (S4, B4, D4), dtype=jnp.float32)
    pe4 = make_positional_encoding(D4, MAX_LEN, dtype=x4.dtype)
    out4 = jax.block_until_ready(positional_encoding_forward(x4, pe4, block_rows=8))
    ref4 = x4 + pe4[:S4][:, None, :]
    assert out4.shape == (S4, B4, D4)
    assert jnp.allclose(out4, ref4, atol=1e-6), "mismatch (padded trailing block)"

    print("KERNEL_OK")
</pallas_src>

<mosaic_0001>
module attributes {stable_mosaic.version = 11 : i64} {
  func.func @_pe_add_flat_kernel(%arg0: i32, %arg1: memref<8x64xf32, #tpu.memory_space<vmem>>, %arg2: memref<8x32xf32, #tpu.memory_space<vmem>>, %arg3: memref<8x64xf32, #tpu.memory_space<vmem>>) attributes {dimension_semantics = [#tpu.dimension_semantics<parallel>], iteration_bounds = array<i64: 1>, scalar_prefetch = 0 : i64, scratch_operands = 0 : i64, tpu.core_type = #tpu.core_type<tc>, window_params = [{transform_indices = @transform_0, window_bounds = array<i64: 8, 64>}, {transform_indices = @transform_1, window_bounds = array<i64: 8, 32>}, {transform_indices = @transform_2, window_bounds = array<i64: 8, 64>}]} {
    %c0 = arith.constant 0 : index
    %c0_0 = arith.constant 0 : index
    %0 = vector.load %arg1[%c0, %c0_0] : memref<8x64xf32, #tpu.memory_space<vmem>>, vector<8x64xf32>
    %c0_1 = arith.constant 0 : index
    %c0_2 = arith.constant 0 : index
    %1 = vector.load %arg2[%c0_1, %c0_2] : memref<8x32xf32, #tpu.memory_space<vmem>>, vector<8x32xf32>
    %2 = tpu.concatenate %1, %1 in 1 : vector<8x32xf32>, vector<8x32xf32> -> vector<8x64xf32>
    %3 = arith.addf %0, %2 : vector<8x64xf32>
    %c0_3 = arith.constant 0 : index
    %c0_4 = arith.constant 0 : index
    %4 = vector.load %arg3[%c0_3, %c0_4] : memref<8x64xf32, #tpu.memory_space<vmem>>, vector<8x64xf32>
    tpu.vector_store %arg3[%c0_3, %c0_4], %3 {strides = array<i32>} : memref<8x64xf32, #tpu.memory_space<vmem>>, vector<8x64xf32>,
    return
  }
  func.func @transform_0(%arg0: i32) -> (i32, i32) {
    %c0_i32 = arith.constant 0 : i32
    %c0_i32_0 = arith.constant 0 : i32
    return %arg0, %c0_i32 : i32, i32
  }
  func.func @transform_1(%arg0: i32) -> (i32, i32) {
    %c0_i32 = arith.constant 0 : i32
    %c0_i32_0 = arith.constant 0 : i32
    return %arg0, %c0_i32 : i32, i32
  }
  func.func @transform_2(%arg0: i32) -> (i32, i32) {
    %c0_i32 = arith.constant 0 : i32
    %c0_i32_0 = arith.constant 0 : i32
    return %arg0, %c0_i32 : i32, i32
  }
}

</mosaic_0001>

<llo_original>
// kernel: tpu_custom_call.1
$region0: #{tpu_custom_call.1}
  #allocation0 [shape = 'u32[]', space=smem, size = 0x4, offset = 0x4, fixed_abs, tag = 'smem constant byte address 0x4 - core index']
  #allocation1 [shape = 'u32[144,128]{1,0:T(1,128)}', space=vmem, size = 0x12000, scoped, tag = 'internal scratch']
  %s0 = inlined_call_operand.vmem [shape: f32[8,64], index: 0, kind: input, shape index: {}]
  %s1 = inlined_call_operand.vmem [shape: f32[64,32], index: 1, kind: input, shape index: {}]
  %s2 = inlined_call_operand.hbm [shape: f32[8,64], index: 2, kind: output, shape index: {}]
  %s3 = sld [smem:[#allocation0]]
  $region18: #{tpu_custom_call.1} parent=0
    _
  %s5 = ssub.s32 1, %s3
  %s6 = scalar_select 0, %s5, %s3
  $region1: #{tpu_custom_call.1} parent=0
    #allocation2 [shape = 'u8[4096]{0}', space=vmem, size = 0x1000, scoped, tag = 'output window, operand 0, single buffered']
    #allocation3 [shape = 's32[1]{0}', space=sflag, size = 0x4, scoped, tag = 'scoped memory for tpu_custom_call.1']
    %7 = vsyncpa [#allocation3], 0
    // Predicated region
    $region2: #{tpu_custom_call.1} parent=1 // pred_check
      _
    $region3: #{tpu_custom_call.1} parent=1 // pred_check_branch
      %9 = sbr.rel (0) target = $region5
    $region4: #{tpu_custom_call.1} parent=1 // pred_region
      _
    $region5: #{tpu_custom_call.1} parent=1 // pred_fallthru
      _
    // Predicated region
    $region6: #{tpu_custom_call.1} parent=1 // pred_check
      _
    $region7: #{tpu_custom_call.1} parent=1 // pred_check_branch
      %11 = sbr.rel (0) target = $region9
    $region8: #{tpu_custom_call.1} parent=1 // pred_region
      _
    $region9: #{tpu_custom_call.1} parent=1 // pred_fallthru
      _
    %v12 = vld [vmem:[%s0] sm:$0xff]
    %v13 = vld [vmem:[%s1] sm:$0xff]
    %15 = vrot.lane.b32.xlu0 %v13, 32
    %v16 = vpop.permute.xlu0 %15
    %vm18 = vcmask 261120
    %v19 = vsel %vm18, %v13, %v16
    %v20 = vadd.f32 %v12, %v19
    %vm21 = vcmask 523264
    %22 = vst.msk [vmem:[#allocation2] sm:$0xff] %vm21, %v20
    // Predicated region
    $region10: #{tpu_custom_call.1} parent=1 // pred_check
      _
    $region11: #{tpu_custom_call.1} parent=1 // pred_check_branch
      %24 = sbr.rel (0) target = $region13
    $region12: #{tpu_custom_call.1} parent=1 // pred_region
      %s26 = ssub.s32 128, 128
      %27 = vsyncadd [#allocation3], %s26
      %s29 = sshll.u32 [#allocation2], 4
      %s30 = int_to_ptr.vmem [resolvable:$true] %s29
      %32 = dma.vmem_to_hbm [thread:$0]  %s30, 128, %s2, [#allocation3]
    $region13: #{tpu_custom_call.1} parent=1 // pred_fallthru
      _
    // Predicated region
    $region14: #{tpu_custom_call.1} parent=1 // pred_check
      _
    $region15: #{tpu_custom_call.1} parent=1 // pred_check_branch
      %34 = sbr.rel (0) target = $region17
    $region16: #{tpu_custom_call.1} parent=1 // pred_region
      %35 = dma.done [#allocation3], 128
    $region17: #{tpu_custom_call.1} parent=1 // pred_fallthru
      _
    %36 = vsyncpa [#allocation3], 1

</llo_original>
